<compile_context>
chip_gen: v7x
topology: tpu7x:2x2x1
jax: 0.10.0
libtpu: 0.0.40
codegen_flags: <defaults>
</compile_context>

<pallas_src>
import functools

import jax
import jax.numpy as jnp
from jax import lax
from jax.experimental import pallas as pl
from jax.experimental.pallas import tpu as pltpu


_WALK_MAX_K = 17                        # threshold walk up to here, bit search above
_TARGET_BLOCK_BYTES = 4 * 1024 * 1024   # target per input pipeline buffer
_MIN_GRID_STEPS = 4                     # keep pipelining + v7x megacore alive
_INT32_MIN = jnp.iinfo(jnp.int32).min


def get_positive_k(k, n):
    """Mirror of TopKMaxPooling.get_positive_k (uses Python round(), as the spec does)."""
    if k <= 0:
        return 0
    elif k < 1:
        return int(round(k * n))
    elif k > n:
        return int(n)
    else:
        return int(k)


# ---------------------------------------------------------------------------
# Kernels
# ---------------------------------------------------------------------------

def _max_kernel(x_ref, o_ref):
    """k == 1 special case: top-1 mean == row max.  Purely memory bound."""
    o_ref[...] = jnp.max(x_ref[...], axis=-1, keepdims=True).astype(o_ref.dtype)


def _topk_mean_kernel(x_ref, o_ref, *, k, use_walk):
    """Mean of the k largest values per row (exact, tie-correct like torch.sort)."""
    x = x_ref[...].astype(jnp.float32)                 # (R, n_pad)
    R, n_pad = x.shape
    kf = jnp.float32(k)

    # Ones matrix for MXU-side popcounts.  Built in-kernel (splat constant,
    # one VMEM-resident copy), hoisted above all loops: no HBM input and no
    # double-buffered pipeline copy eating VMEM.
    ones = jnp.ones((n_pad, 128), jnp.bfloat16)

    def lane_count(mask):
        # Row-wise popcount of a boolean (rows, n_pad) mask on the MXU.
        # Exact: 0/1 are exact in bf16, accumulation is f32, n_pad < 2**24.
        # Keeps the XLU free for the running-max / final-sum reductions.
        return jnp.dot(mask.astype(jnp.bfloat16), ones,
                       preferred_element_type=jnp.float32)[:, :1]

    # Two independent row sub-chunks: each step is a serial mask(VPU) ->
    # count(MXU) -> compare/select chain, so interleaving two chains hides the
    # MXU-result / XLU latency (biggest win on v5e/v6e's sequential MRF).
    if R >= 16 and R % 16 == 0:
        half = R // 2
        chunks = (x[:half], x[half:])
        row_off = (0, half)
    else:
        chunks = (x,)
        row_off = (0,)

    if use_walk:
        # Small k (2..17): walk the threshold down through distinct values
        # (<= k-1 steps); stops at the exact k-th largest value.  fori_loop
        # bounds live ranges (a static Python `for` would not) and unroll=2
        # gives the scheduler room to co-issue the two chains.
        def walk_body(_, thrs):
            out = []
            for c, thr in zip(chunks, thrs):
                cnt_ge = lane_count(c >= thr)
                nxt = jnp.max(jnp.where(c < thr, c, -jnp.inf),
                              axis=-1, keepdims=True)
                out.append(jnp.where(cnt_ge < kf, nxt, thr))
            return tuple(out)

        thrs = tuple(jnp.max(c, axis=-1, keepdims=True) for c in chunks)
        thrs = lax.fori_loop(0, k - 1, walk_body, thrs, unroll=2)
    else:
        # Large k: exact k-th largest via a bit-level binary search on
        # order-preserving int32 keys.  31 MXU count passes, independent of k.
        def to_keys(c):
            bits = pltpu.bitcast(c, jnp.int32)
            return jnp.where(bits < 0, bits ^ jnp.int32(0x7FFFFFFF), bits)

        keys = tuple(to_keys(c) for c in chunks)
        los = tuple(
            jnp.where(lane_count(kk >= 0) >= kf,
                      jnp.int32(0), jnp.int32(_INT32_MIN))
            for kk in keys)

        def search_body(_, carry):
            los, step = carry
            out = []
            for kk, lo in zip(keys, los):
                cand = lo + step
                cnt = lane_count(kk >= cand)
                # cand > lo guards against int32 wraparound near INT32_MAX.
                take = jnp.logical_and(cand > lo, cnt >= kf)
                out.append(jnp.where(take, cand, lo))
            return tuple(out), step // 2

        los, _ = lax.fori_loop(0, 31, search_body,
                               (los, jnp.int32(1 << 30)), unroll=4)
        thrs = tuple(
            pltpu.bitcast(jnp.where(lo < 0, lo ^ jnp.int32(0x7FFFFFFF), lo),
                          jnp.float32)
            for lo in los)

    # Exact top-k mean from the k-th largest value (ties corrected), matching
    # torch.sort(descending=True).narrow(2, 0, k).sum(2) / k.
    # TODO(synk): NaN inputs diverge from torch.sort semantics (all NaN
    # comparisons are false); only relevant if NaNs can occur upstream.
    for off, c, thr in zip(row_off, chunks, thrs):
        gt = c > thr
        cnt_gt = lane_count(gt)
        sum_gt = jnp.sum(jnp.where(gt, c, jnp.float32(0.0)),
                         axis=-1, keepdims=True)
        mean_k = (sum_gt + (kf - cnt_gt) * thr) / kf
        o_ref[pl.ds(off, c.shape[0]), :] = mean_k.astype(o_ref.dtype)


# ---------------------------------------------------------------------------
# Tiling / wrapper
# ---------------------------------------------------------------------------

def _vmem_budget():
    """(tile-sizing budget, scoped vmem_limit_bytes), generation-aware."""
    cap = 64 * 1024 * 1024               # conservative default (v7x per-core VMEM)
    try:
        info = pltpu.get_tpu_info()
        cap = int(getattr(info, "vmem_capacity_bytes", cap) or cap)
    except Exception:
        pass
    budget = min(cap // 2, 64 * 1024 * 1024)        # ~32 MiB v7x, ~64 MiB v5e/v6e
    limit = min((cap * 3) // 4, 96 * 1024 * 1024)   # scoped limit with headroom
    return budget, limit


def _pick_tile_r(rows, n_pad, itemsize, budget, heavy_compute):
    """Row-tile size: large enough to amortise per-step overhead, small enough
    for the VMEM budget, and never collapsing the grid to a single step."""
    # Per-row VMEM footprint of one grid step.
    per_row = 2 * n_pad * itemsize                    # 2 input pipeline buffers
    if heavy_compute:
        per_row += 4 * n_pad * 4                      # f32 copy, i32 keys, temps
    fixed = n_pad * 128 * 2 if heavy_compute else 0   # resident ones matrix
    tile_vmem = max(((budget - fixed) // per_row) // 8 * 8, 8)

    # >= ~4 MiB per input pipeline buffer (8 MiB on the pure HBM-bound k==1
    # path) so the ~0.35us per-step cost is amortised -- matters most at
    # v6e/v7x HBM bandwidth.
    target = _TARGET_BLOCK_BYTES if heavy_compute else 2 * _TARGET_BLOCK_BYTES
    tile_target = max(((-(-target // (n_pad * itemsize))) + 7) // 8 * 8, 8)

    tile = min(tile_vmem, tile_target)

    # Keep the grid at >= _MIN_GRID_STEPS steps when rows allow it: a 1-step
    # grid serialises DMA with compute and idles one v7x TensorCore.
    if rows >= _MIN_GRID_STEPS * 16:
        tile = min(tile, max((rows // _MIN_GRID_STEPS) // 8 * 8, 8))

    if tile >= rows:
        return rows                                   # full-dim block is legal
    if tile >= 16:
        tile = (tile // 16) * 16                      # even 2-chunk split
    return max(tile, 8)


def topk_max_pooling(x, kmax=1.0):
    """Pallas TPU implementation of TopKMaxPooling.forward.

    x: (B, C, H, W) float array (NCHW, like the PyTorch module).
    Returns: (B, C) array with the same dtype as x.
    """
    B, C, H, W = x.shape
    n = H * W
    k = get_positive_k(kmax, n)
    if k < 1:
        # PyTorch would produce 0/0 = nan here; not a meaningful configuration.
        raise ValueError("kmax resolves to k=0; nothing to pool.")
    assert n < (1 << 24), "MXU f32-accumulated popcounts are exact only for n < 2**24"

    rows = B * C
    x2 = x.reshape(rows, n)

    # Lane-pad the flattened spatial axis to a multiple of 128 with -inf:
    # contiguous DMAs + full vreg lanes.  -inf never enters the top-k and
    # contributes 0 to the thresholded sum, so results are unchanged.
    n_pad = ((n + 127) // 128) * 128
    if n_pad != n:
        x2 = jnp.pad(x2, ((0, 0), (0, n_pad - n)), constant_values=-jnp.inf)

    budget, vmem_limit = _vmem_budget()
    tile_r = _pick_tile_r(rows, n_pad, x.dtype.itemsize, budget,
                          heavy_compute=(k > 1))
    grid = (pl.cdiv(rows, tile_r),)

    compiler_params = pltpu.CompilerParams(
        dimension_semantics=("parallel",),   # rows independent -> megacore on v7x
        vmem_limit_bytes=vmem_limit,
    )
    out_shape = jax.ShapeDtypeStruct((rows, 1), x.dtype)
    x_spec = pl.BlockSpec((tile_r, n_pad), lambda i: (i, 0))
    # TODO(synk): output block is lane-width 1 (masked stores); output traffic
    # is n-times smaller than input so a lane-dense repack is second-order.
    o_spec = pl.BlockSpec((tile_r, 1), lambda i: (i, 0))

    if k == 1:
        kernel = _max_kernel
    else:
        kernel = functools.partial(_topk_mean_kernel, k=k,
                                   use_walk=(k <= _WALK_MAX_K))

    out = pl.pallas_call(
        kernel,
        out_shape=out_shape,
        grid=grid,
        in_specs=[x_spec],
        out_specs=o_spec,
        compiler_params=compiler_params,
    )(x2)

    return out.reshape(B, C)


def _reference(x, kmax=1.0):
    """Pure-JAX reference (sort-based), mirrors the PyTorch forward."""
    B, C, H, W = x.shape
    n = H * W
    k = get_positive_k(kmax, n)
    flat = x.reshape(B, C, n)
    srt = jnp.sort(flat, axis=2)[..., ::-1]        # descending
    return srt[..., :k].sum(axis=2) / k


if __name__ == "__main__":
    key = jax.random.PRNGKey(0)
    x = jax.random.normal(key, (2, 4, 16, 16), dtype=jnp.float32)

    # Default module config kmax=1.0 -> k=1 (plain global max pooling path).
    out1 = jax.block_until_ready(topk_max_pooling(x, kmax=1.0))
    ref1 = _reference(x, kmax=1.0)
    assert out1.shape == (2, 4)
    assert jnp.allclose(out1, ref1, atol=1e-5, rtol=1e-5)

    # Small-k path (threshold walk): k = round(0.05 * 256) = 13.
    out2 = jax.block_until_ready(topk_max_pooling(x, kmax=0.05))
    assert jnp.allclose(out2, _reference(x, kmax=0.05), atol=1e-5, rtol=1e-5)

    # Large-k path (bit-level binary search): k = round(0.25 * 256) = 64.
    out3 = jax.block_until_ready(topk_max_pooling(x, kmax=0.25))
    assert jnp.allclose(out3, _reference(x, kmax=0.25), atol=1e-5, rtol=1e-5)

    # Non-128-multiple spatial (7x7 -> lane-padded with -inf), multi-step grid
    # exercising the two-chain interleave (rows=64 -> 4 blocks of 16 rows).
    key2 = jax.random.split(jax.random.PRNGKey(0))[1]
    y = jax.random.normal(key2, (2, 32, 7, 7), dtype=jnp.float32)
    out4 = jax.block_until_ready(topk_max_pooling(y, kmax=0.3))    # k=15, walk
    assert jnp.allclose(out4, _reference(y, kmax=0.3), atol=1e-5, rtol=1e-5)
    out5 = jax.block_until_ready(topk_max_pooling(y, kmax=0.6))    # k=29, search
    assert jnp.allclose(out5, _reference(y, kmax=0.6), atol=1e-5, rtol=1e-5)

    print("KERNEL_OK")
</pallas_src>

<mosaic_0001>
module attributes {stable_mosaic.version = 11 : i64} {
  func.func @_max_kernel(%arg0: i32, %arg1: memref<8x256xf32, #tpu.memory_space<vmem>>, %arg2: memref<8x1xf32, #tpu.memory_space<vmem>>) attributes {dimension_semantics = [#tpu.dimension_semantics<parallel>], iteration_bounds = array<i64: 1>, scalar_prefetch = 0 : i64, scratch_operands = 0 : i64, tpu.core_type = #tpu.core_type<tc>, window_params = [{transform_indices = @transform_0, window_bounds = array<i64: 8, 256>}, {transform_indices = @transform_1, window_bounds = array<i64: 8, 1>}]} {
    %c0 = arith.constant 0 : index
    %c0_0 = arith.constant 0 : index
    %0 = vector.load %arg1[%c0, %c0_0] : memref<8x256xf32, #tpu.memory_space<vmem>>, vector<8x256xf32>
    %cst = arith.constant dense<0xFF800000> : vector<8xf32>
    %1 = vector.multi_reduction <maximumf>, %0, %cst [1] : vector<8x256xf32> to vector<8xf32>
    %2 = vector.shape_cast %1 : vector<8xf32> to vector<8x1xf32>
    %c0_1 = arith.constant 0 : index
    %c0_2 = arith.constant 0 : index
    %3 = vector.load %arg2[%c0_1, %c0_2] : memref<8x1xf32, #tpu.memory_space<vmem>>, vector<8x1xf32>
    tpu.vector_store %arg2[%c0_1, %c0_2], %2 {strides = array<i32>} : memref<8x1xf32, #tpu.memory_space<vmem>>, vector<8x1xf32>,
    return
  }
  func.func @transform_0(%arg0: i32) -> (i32, i32) {
    %c0_i32 = arith.constant 0 : i32
    %c0_i32_0 = arith.constant 0 : i32
    return %arg0, %c0_i32 : i32, i32
  }
  func.func @transform_1(%arg0: i32) -> (i32, i32) {
    %c0_i32 = arith.constant 0 : i32
    %c0_i32_0 = arith.constant 0 : i32
    return %arg0, %c0_i32 : i32, i32
  }
}

</mosaic_0001>

<llo_original>
// kernel: tpu_custom_call.1
$region0: #{tpu_custom_call.1}
  #allocation0 [shape = 'u32[]', space=smem, size = 0x4, offset = 0x4, fixed_abs, tag = 'smem constant byte address 0x4 - core index']
  #allocation1 [shape = 'u32[144,128]{1,0:T(1,128)}', space=vmem, size = 0x12000, scoped, tag = 'internal scratch']
  %s0 = inlined_call_operand.hbm [shape: f32[8,256], index: 0, kind: input, shape index: {}]
  %s1 = inlined_call_operand.vmem [shape: f32[8,1], index: 1, kind: output, shape index: {}]
  %s2 = sld [smem:[#allocation0]]
  $region18: #{tpu_custom_call.1} parent=0
    _
  %s4 = ssub.s32 1, %s2
  %s5 = scalar_select 0, %s4, %s2
  $region1: #{tpu_custom_call.1} parent=0
    #allocation2 [shape = 'u8[8192]{0}', space=vmem, size = 0x2000, scoped, tag = 'input window, operand 0, single buffered']
    #allocation3 [shape = 's32[1]{0}', space=sflag, size = 0x4, scoped, tag = 'scoped memory for tpu_custom_call.1']
    %6 = vsyncpa [#allocation3], 0
    // Predicated region
    $region2: #{tpu_custom_call.1} parent=1 // pred_check
      _
    $region3: #{tpu_custom_call.1} parent=1 // pred_check_branch
      %8 = sbr.rel (0) target = $region5
    $region4: #{tpu_custom_call.1} parent=1 // pred_region
      %s10 = ssub.s32 256, 256
      %11 = vsyncadd [#allocation3], %s10
      %s13 = sshll.u32 [#allocation2], 4
      %s14 = int_to_ptr.vmem [resolvable:$true] %s13
      %16 = dma.hbm_to_vmem [thread:$0]  %s0, 256, %s14, [#allocation3]
    $region5: #{tpu_custom_call.1} parent=1 // pred_fallthru
      _
    // Predicated region
    $region6: #{tpu_custom_call.1} parent=1 // pred_check
      _
    $region7: #{tpu_custom_call.1} parent=1 // pred_check_branch
      %18 = sbr.rel (0) target = $region9
    $region8: #{tpu_custom_call.1} parent=1 // pred_region
      %19 = dma.done [#allocation3], 256
    $region9: #{tpu_custom_call.1} parent=1 // pred_fallthru
      _
    %v20 = vld [vmem:[#allocation2] sm:$0xff]
    %v21 = vld [vmem:[#allocation2 + $0x8] sm:$0xff]
    %v22 = vmax.f32 %v20, %v21
    %23 = vmax.xlane.f32.xlu0 %v22
    %v24 = vpop.xlane.xlu0 %23
    %vm25 = vcmask 7168
    %26 = vst.msk [vmem:[%s1] sm:$0xff] %vm25, %v24
    // Predicated region
    $region10: #{tpu_custom_call.1} parent=1 // pred_check
      _
    $region11: #{tpu_custom_call.1} parent=1 // pred_check_branch
      %28 = sbr.rel (0) target = $region13
    $region12: #{tpu_custom_call.1} parent=1 // pred_region
      _
    $region13: #{tpu_custom_call.1} parent=1 // pred_fallthru
      _
    // Predicated region
    $region14: #{tpu_custom_call.1} parent=1 // pred_check
      _
    $region15: #{tpu_custom_call.1} parent=1 // pred_check_branch
      %30 = sbr.rel (0) target = $region17
    $region16: #{tpu_custom_call.1} parent=1 // pred_region
      _
    $region17: #{tpu_custom_call.1} parent=1 // pred_fallthru
      _
    %31 = vsyncpa [#allocation3], 1

</llo_original>
